<compile_context>
chip_gen: v7x
topology: tpu7x:2x2x1
jax: 0.10.0
libtpu: 0.0.40
codegen_flags: <defaults>
</compile_context>

<pallas_src>
import functools

import jax
import jax.numpy as jnp
from jax.experimental import pallas as pl
from jax.experimental.pallas import tpu as pltpu

_LANE = 128
_SUB = 8


def _prod(xs):
    r = 1
    for v in xs:
        r *= int(v)
    return r


def _cdiv(a, b):
    return -(-a // b)


def _round_up(a, b):
    return _cdiv(a, b) * b


def _max_identity(dtype):
    dtype = jnp.dtype(dtype)
    if jnp.issubdtype(dtype, jnp.floating):
        # fp8 dtypes have no -inf representation; use the finite minimum there.
        if dtype.itemsize == 1:
            return float(jnp.finfo(dtype).min)
        return float("-inf")
    if jnp.issubdtype(dtype, jnp.integer):
        return int(jnp.iinfo(dtype).min)
    raise NotImplementedError(f"unsupported dtype for max: {dtype}")


def _vmem_capacity_bytes():
    try:
        return int(pltpu.get_tpu_info().vmem_capacity_bytes)
    except Exception:
        return 64 << 20  # conservative default (v7x physical VMEM)


def _num_tensorcores():
    """Best-effort TensorCores-per-chip query (v7x/v4/v5p: 2, v5e/v6e: 1)."""
    try:
        info = pltpu.get_tpu_info()
        for attr in ("num_cores", "core_count", "num_tensorcores",
                     "tensor_cores_per_chip", "cores_per_chip"):
            v = getattr(info, attr, None)
            if isinstance(v, int) and v > 0:
                return v
    except Exception:
        pass
    try:
        kind = jax.devices()[0].device_kind.lower()
        if any(tag in kind for tag in ("v7", "7x", "v4", "v5p")):
            return 2
    except Exception:
        pass
    return 1


def _budgets(block_budget_override=None):
    vmem_cap = _vmem_capacity_bytes()
    # ~8 MiB per in-flight input block keeps the ~0.35 us per-grid-step
    # overhead well under the DMA time on all generations, while the
    # double-buffered 2 x 8 MiB still fits v7x's 64 MiB VMEM.
    block_budget = max(min(vmem_cap // 8, 8 << 20), 1 << 20)
    if block_budget_override is not None:
        block_budget = int(block_budget_override)
    vmem_limit = int(min(vmem_cap * 3 // 4, 100 << 20))
    return block_budget, vmem_limit


def _max_reduce_kernel(x_ref, o_ref, *, red_grid_axis, tr, r_total, need_mask, fill):
    """Reduce axis 1 of the block; running max kept resident in the output block.

    The reduction-tail mask is gated (pl.when) to the LAST reduction block
    only; earlier blocks are fully in-bounds and pay a plain max.
    """
    k = pl.program_id(red_grid_axis)
    x = x_ref[...]

    def _accum(part):
        @pl.when(k == 0)
        def _():
            o_ref[...] = part

        @pl.when(k > 0)
        def _():
            o_ref[...] = jnp.maximum(o_ref[...], part)

    if need_mask:
        last = pl.num_programs(red_grid_axis) - 1

        @pl.when(k != last)
        def _():
            _accum(jnp.max(x, axis=1, keepdims=True))

        @pl.when(k == last)
        def _():
            idx = k * tr + jax.lax.broadcasted_iota(jnp.int32, x.shape, 1)
            xm = jnp.where(idx < r_total, x, jnp.asarray(fill, x.dtype))
            _accum(jnp.max(xm, axis=1, keepdims=True))
    else:
        _accum(jnp.max(x, axis=1, keepdims=True))


def _max_last_axis_2d(x2, *, block_budget, vmem_limit, cores):
    """Max over the last axis of a 2-D array (P, R) -> (P, 1) via Pallas."""
    P, R = (int(d) for d in x2.shape)
    dtype = x2.dtype
    itemsize = jnp.dtype(dtype).itemsize
    fill = _max_identity(dtype)
    subm = _SUB * max(1, 4 // itemsize)  # dtype-aware sublane multiple

    # Reduction tile over the lane axis.
    if R * subm * itemsize <= block_budget:
        TR = R                                       # whole extent (full dim)
    else:
        TR = max(_LANE, (block_budget // (subm * itemsize)) // _LANE * _LANE)
    need_mask = (R % TR) != 0

    # Row tile.
    if P <= subm:
        TP = P
    else:
        rows_fit = max(subm, (block_budget // max(1, TR * itemsize)) // subm * subm)
        TP = min(_round_up(P, subm), rows_fit)
        if TP >= P:
            TP = P                                   # full dim is always legal
        if cores >= 2 and P > subm:
            steps = _cdiv(P, TP)
            if steps < 2:
                TP = max(subm, _round_up(_cdiv(P, 2), subm))
            elif steps % 2 == 1 and steps <= 6:
                cand = max(subm, _round_up(_cdiv(P, steps + 1), subm))
                if _cdiv(P, cand) % 2 == 0:
                    TP = cand

    grid = (_cdiv(P, TP), _cdiv(R, TR))
    kernel = functools.partial(
        _max_reduce_kernel, red_grid_axis=1, tr=TR, r_total=R,
        need_mask=need_mask, fill=fill)

    return pl.pallas_call(
        kernel,
        out_shape=jax.ShapeDtypeStruct((P, 1), dtype),
        grid_spec=pltpu.PrefetchScalarGridSpec(
            num_scalar_prefetch=0,
            grid=grid,
            in_specs=[pl.BlockSpec((TP, TR), lambda i, k: (i, k))],
            out_specs=pl.BlockSpec((TP, 1), lambda i, k: (i, 0)),
        ),
        compiler_params=pltpu.CompilerParams(
            dimension_semantics=("parallel", "arbitrary"),
            vmem_limit_bytes=vmem_limit,
        ),
    )(x2)


def max_along_dim(x: jax.Array, dim: int, keepdim: bool = False,
                  *, _block_budget_override=None) -> jax.Array:
    """Equivalent of torch.max(x, dim=dim, keepdim=keepdim).values."""
    ndim = x.ndim
    if dim < 0:
        dim += ndim
    if not (0 <= dim < ndim):
        raise ValueError("dim out of range")

    # Mosaic max on packed-bool refs is fragile; reduce as int32, cast back.
    was_bool = (x.dtype == jnp.bool_)
    if was_bool:
        x = x.astype(jnp.int32)

    shape = x.shape
    R = int(shape[dim])
    lead = tuple(int(s) for s in shape[:dim])
    trail = tuple(int(s) for s in shape[dim + 1:])
    P = _prod(lead)
    S = _prod(trail)
    dtype = x.dtype
    itemsize = jnp.dtype(dtype).itemsize
    fill = _max_identity(dtype)
    subm = _SUB * max(1, 4 // itemsize)     # dtype-aware sublane multiple
    ts_min = max(_LANE, 512 // itemsize)    # keep >= 512 B contiguous DMA runs

    block_budget, vmem_limit = _budgets(_block_budget_override)
    cores = _num_tensorcores()

    if dim == ndim - 1:
        # ---------------- lane-axis reduction: view (P, R) ----------------
        x2 = x.reshape(P, R)
        repack_g = 0
        if P < subm and R >= 2 * _LANE:
            # Small-P repack: fold the contiguous last axis into extra rows so
            # all sublanes of every vreg / VMEM row carry useful data.
            for mul in range(min(R // (2 * _LANE), 16), 0, -1):
                c = mul * _LANE
                if R % c == 0:
                    repack_g = R // c
                    x2 = x2.reshape(P * repack_g, c)
                    break
        out2 = _max_last_axis_2d(x2, block_budget=block_budget,
                                 vmem_limit=vmem_limit, cores=cores)
        if repack_g:
            # Tiny (P, G) epilogue fold of the per-chunk partial maxima.
            out2 = jnp.max(out2.reshape(P, repack_g), axis=1, keepdims=True)
        out2 = out2.reshape((lead + (1,)) if keepdim else lead)
        return out2.astype(jnp.bool_) if was_bool else out2

    # ------------- middle-axis reduction: view (P, R, S), reduce axis 1 -------------
    x3 = x.reshape(P, R, S)

    # Lane tile over S (large, 128-aligned, or the full extent).
    if S <= ts_min:
        TS = S
    else:
        ts_fit = max(ts_min, (block_budget // (subm * itemsize)) // _LANE * _LANE)
        TS = min(_round_up(S, _LANE), ts_fit)
        if TS >= S:
            TS = S                                  # full dim is always legal

    # Reduction tile over R: take all of R if it fits, else block + accumulate.
    if R * TS * itemsize <= block_budget:
        TR = R
    else:
        TR = max(subm, (block_budget // max(1, TS * itemsize)) // subm * subm)
    need_mask = (R % TR) != 0

    # Fold several leading rows into one block when the (R, S) tile is small.
    blk_bytes = TR * TS * itemsize
    TPb = max(1, min(P, block_budget // max(1, blk_bytes)))

    n_p = _cdiv(P, TPb)
    n_s = _cdiv(S, TS)
    if cores >= 2:
        # Expose work for both TensorCores, preferring an even step count.
        if n_p * n_s < 2:
            if P >= 2:
                TPb = _cdiv(P, 2)
                n_p = _cdiv(P, TPb)
            elif S > ts_min:
                TS = max(_LANE, _round_up(_cdiv(S, 2), _LANE))
                n_s = _cdiv(S, TS)
        elif (n_p * n_s) % 2 == 1 and n_p * n_s <= 6 and TPb > 1:
            cand = max(1, _cdiv(P, n_p + 1))
            if (_cdiv(P, cand) * n_s) % 2 == 0:
                TPb = cand
                n_p = _cdiv(P, TPb)
    n_r = _cdiv(R, TR)

    kernel = functools.partial(
        _max_reduce_kernel, red_grid_axis=2, tr=TR, r_total=R,
        need_mask=need_mask, fill=fill)

    out3 = pl.pallas_call(
        kernel,
        out_shape=jax.ShapeDtypeStruct((P, 1, S), dtype),
        grid_spec=pltpu.PrefetchScalarGridSpec(
            num_scalar_prefetch=0,
            grid=(n_p, n_s, n_r),
            in_specs=[pl.BlockSpec((TPb, TR, TS), lambda p, j, k: (p, k, j))],
            out_specs=pl.BlockSpec((TPb, 1, TS), lambda p, j, k: (p, 0, j)),
        ),
        compiler_params=pltpu.CompilerParams(
            dimension_semantics=("parallel", "parallel", "arbitrary"),
            vmem_limit_bytes=vmem_limit,
        ),
    )(x3)

    target_shape = lead + ((1,) if keepdim else ()) + trail
    out3 = out3.reshape(target_shape)
    return out3.astype(jnp.bool_) if was_bool else out3


class MaxPallas:
    """Mirror of the PyTorch `Max` module (values only; no parameters)."""

    def __init__(self, dim: int, keepdim: bool = False):
        self.dim = dim
        self.keepdim = keepdim

    def __call__(self, x: jax.Array) -> jax.Array:
        return max_along_dim(x, self.dim, self.keepdim)


if __name__ == "__main__":
    key = jax.random.PRNGKey(0)
    # NCHW layout consistent with the module's generic forward.
    x = jax.random.normal(key, (2, 4, 16, 16), dtype=jnp.float32)

    # Reduce over channel dim (middle-axis path).
    out = jax.block_until_ready(MaxPallas(dim=1, keepdim=False)(x))
    ref = jnp.max(x, axis=1)
    assert out.shape == ref.shape, (out.shape, ref.shape)
    assert jnp.allclose(out, ref), "mismatch vs jnp.max reference (dim=1)"

    # Reduce over last dim with keepdim (lane-axis path).
    out2 = jax.block_until_ready(MaxPallas(dim=-1, keepdim=True)(x))
    ref2 = jnp.max(x, axis=-1, keepdims=True)
    assert out2.shape == ref2.shape and jnp.allclose(out2, ref2), "dim=-1 mismatch"

    # Reduce over the leading dim (middle-axis path, P == 1).
    out3 = jax.block_until_ready(MaxPallas(dim=0, keepdim=False)(x))
    ref3 = jnp.max(x, axis=0)
    assert out3.shape == ref3.shape and jnp.allclose(out3, ref3), "dim=0 mismatch"

    # Small-P lane-path sublane repack (P < sublane count, long last axis).
    xs = jax.random.normal(jax.random.PRNGKey(1), (3, 640), dtype=jnp.float32)
    outs = jax.block_until_ready(MaxPallas(dim=-1, keepdim=False)(xs))
    refs = jnp.max(xs, axis=-1)
    assert outs.shape == refs.shape and jnp.allclose(outs, refs), "repack mismatch"

    # Blocked reduction with tail mask gated to the last block (lane path).
    xm = jax.random.normal(jax.random.PRNGKey(2), (16, 600), dtype=jnp.float32)
    outm = jax.block_until_ready(
        max_along_dim(xm, -1, False, _block_budget_override=16 << 10))
    assert jnp.allclose(outm, jnp.max(xm, axis=-1)), "masked lane-path mismatch"

    # Blocked reduction with tail mask gated to the last block (middle path).
    xm3 = jax.random.normal(jax.random.PRNGKey(3), (2, 100, 256), dtype=jnp.float32)
    outm3 = jax.block_until_ready(
        max_along_dim(xm3, 1, True, _block_budget_override=64 << 10))
    assert jnp.allclose(outm3, jnp.max(xm3, axis=1, keepdims=True)), "masked mid mismatch"

    # Bool input (reduced as int32 around the kernel, cast back to bool).
    xb = x > 0.0
    outb = jax.block_until_ready(MaxPallas(dim=1, keepdim=False)(xb))
    assert outb.dtype == jnp.bool_
    assert jnp.array_equal(outb, jnp.max(xb, axis=1)), "bool path mismatch"

    print("KERNEL_OK")
</pallas_src>

<mosaic_0001>
module attributes {stable_mosaic.version = 11 : i64} {
  func.func @_max_reduce_kernel(%arg0: i32, %arg1: i32, %arg2: i32, %arg3: memref<2x4x256xf32, #tpu.memory_space<vmem>>, %arg4: memref<2x1x256xf32, #tpu.memory_space<vmem>>) attributes {dimension_semantics = [#tpu.dimension_semantics<parallel>, #tpu.dimension_semantics<parallel>, #tpu.dimension_semantics<arbitrary>], iteration_bounds = array<i64: 1, 1, 1>, scalar_prefetch = 0 : i64, scratch_operands = 0 : i64, tpu.core_type = #tpu.core_type<tc>, window_params = [{transform_indices = @transform_0, window_bounds = array<i64: 2, 4, 256>}, {transform_indices = @transform_1, window_bounds = array<i64: 2, 1, 256>}]} {
    %c0 = arith.constant 0 : index
    %c0_0 = arith.constant 0 : index
    %c0_1 = arith.constant 0 : index
    %0 = vector.load %arg3[%c0, %c0_0, %c0_1] : memref<2x4x256xf32, #tpu.memory_space<vmem>>, vector<2x4x256xf32>
    %cst = arith.constant dense<0xFF800000> : vector<2x256xf32>
    %1 = vector.multi_reduction <maximumf>, %0, %cst [1] : vector<2x4x256xf32> to vector<2x256xf32>
    %2 = vector.shape_cast %1 : vector<2x256xf32> to vector<2x1x256xf32>
    %c0_i32 = arith.constant 0 : i32
    %3 = arith.cmpi eq, %arg2, %c0_i32 : i32
    %4 = arith.extui %3 : i1 to i32
    %c0_i32_2 = arith.constant 0 : i32
    %5 = arith.cmpi ne, %4, %c0_i32_2 : i32
    scf.if %5 {
      %c0_5 = arith.constant 0 : index
      %c0_6 = arith.constant 0 : index
      %c0_7 = arith.constant 0 : index
      %9 = vector.load %arg4[%c0_5, %c0_6, %c0_7] : memref<2x1x256xf32, #tpu.memory_space<vmem>>, vector<2x1x256xf32>
      tpu.vector_store %arg4[%c0_5, %c0_6, %c0_7], %2 {strides = array<i32>} : memref<2x1x256xf32, #tpu.memory_space<vmem>>, vector<2x1x256xf32>,
    } else {
    }
    %c0_i32_3 = arith.constant 0 : i32
    %6 = arith.cmpi sgt, %arg2, %c0_i32_3 : i32
    %7 = arith.extui %6 : i1 to i32
    %c0_i32_4 = arith.constant 0 : i32
    %8 = arith.cmpi ne, %7, %c0_i32_4 : i32
    scf.if %8 {
      %c0_5 = arith.constant 0 : index
      %c0_6 = arith.constant 0 : index
      %c0_7 = arith.constant 0 : index
      %9 = vector.load %arg4[%c0_5, %c0_6, %c0_7] : memref<2x1x256xf32, #tpu.memory_space<vmem>>, vector<2x1x256xf32>
      %10 = arith.maximumf %9, %2 : vector<2x1x256xf32>
      %c0_8 = arith.constant 0 : index
      %c0_9 = arith.constant 0 : index
      %c0_10 = arith.constant 0 : index
      %11 = vector.load %arg4[%c0_8, %c0_9, %c0_10] : memref<2x1x256xf32, #tpu.memory_space<vmem>>, vector<2x1x256xf32>
      tpu.vector_store %arg4[%c0_8, %c0_9, %c0_10], %10 {strides = array<i32>} : memref<2x1x256xf32, #tpu.memory_space<vmem>>, vector<2x1x256xf32>,
    } else {
    }
    return
  }
  func.func @transform_0(%arg0: i32, %arg1: i32, %arg2: i32) -> (i32, i32, i32) {
    %c0_i32 = arith.constant 0 : i32
    return %arg0, %arg2, %arg1 : i32, i32, i32
  }
  func.func @transform_1(%arg0: i32, %arg1: i32, %arg2: i32) -> (i32, i32, i32) {
    %c0_i32 = arith.constant 0 : i32
    %c0_i32_0 = arith.constant 0 : i32
    return %arg0, %c0_i32, %arg1 : i32, i32, i32
  }
}

</mosaic_0001>

<llo_original>
// kernel: tpu_custom_call.1
$region0: #{tpu_custom_call.1}
  #allocation0 [shape = 'u32[]', space=smem, size = 0x4, offset = 0x4, fixed_abs, tag = 'smem constant byte address 0x4 - core index']
  #allocation1 [shape = 'u32[144,128]{1,0:T(1,128)}', space=vmem, size = 0x12000, scoped, tag = 'internal scratch']
  %s0 = inlined_call_operand.hbm [shape: f32[2,4,256], index: 0, kind: input, shape index: {}]
  %s1 = inlined_call_operand.hbm [shape: f32[2,1,256], index: 1, kind: output, shape index: {}]
  %s2 = sld [smem:[#allocation0]]
  $region26: #{tpu_custom_call.1} parent=0
    _
  %s4 = ssub.s32 1, %s2
  %s5 = scalar_select 0, %s4, %s2
  $region1: #{tpu_custom_call.1} parent=0
    #allocation2 [shape = 'u8[8192]{0}', space=vmem, size = 0x2000, scoped, tag = 'input window, operand 0, single buffered']
    #allocation3 [shape = 's32[1]{0}', space=sflag, size = 0x4, scoped, tag = 'scoped memory for tpu_custom_call.1']
    #allocation4 [shape = 's32[1]{0}', space=sflag, size = 0x4, scoped, tag = 'scoped memory for tpu_custom_call.1']
    #allocation5 [shape = 'u8[2048]{0}', space=vmem, size = 0x800, scoped, tag = 'output window, operand 0, single buffered']
    %6 = vsyncpa [#allocation3], 0
    %7 = vsyncpa [#allocation4], 0
    // Predicated region
    $region2: #{tpu_custom_call.1} parent=1 // pred_check
      _
    $region3: #{tpu_custom_call.1} parent=1 // pred_check_branch
      %9 = sbr.rel (0) target = $region5
    $region4: #{tpu_custom_call.1} parent=1 // pred_region
      %s11 = ssub.s32 256, 256
      %12 = vsyncadd [#allocation3], %s11
      %s13 = sshll.u32 [#allocation2], 4
      %s14 = int_to_ptr.vmem [resolvable:$true] %s13
      %19 = dma.hbm_to_vmem [thread:$0]  %s0, 256, %s14, [#allocation3], 128, 128, 8
    $region5: #{tpu_custom_call.1} parent=1 // pred_fallthru
      _
    // Predicated region
    $region6: #{tpu_custom_call.1} parent=1 // pred_check
      _
    $region7: #{tpu_custom_call.1} parent=1 // pred_check_branch
      %21 = sbr.rel (0) target = $region9
    $region8: #{tpu_custom_call.1} parent=1 // pred_region
      %22 = dma.done [#allocation3], 256
    $region9: #{tpu_custom_call.1} parent=1 // pred_fallthru
      _
    %v23 = vld [vmem:[#allocation2] sm:$0xff]
    %v24 = vld [vmem:[#allocation2 + $0x8] sm:$0xff]
    %v27 = vcombine.high %v23, %v23
    %v28 = vcombine.high %v24, %v24
    %vm31 = vcmask 1043456
    %v32 = vsel %vm31, %v23, -inf
    %v33 = vrot.slane %v32, 4
    %v34 = vmax.f32 %v32, %v33
    %v35 = vrot.slane %v34, 2
    %v36 = vmax.f32 %v34, %v35
    %v37 = vrot.slane %v36, 1
    %v38 = vmax.f32 %v36, %v37
    %v39 = vsel %vm31, %v27, -inf
    %v40 = vrot.slane %v39, 4
    %v41 = vmax.f32 %v39, %v40
    %v42 = vrot.slane %v41, 2
    %v43 = vmax.f32 %v41, %v42
    %v44 = vrot.slane %v43, 1
    %v45 = vmax.f32 %v43, %v44
    %v46 = vsel %vm31, %v24, -inf
    %v47 = vrot.slane %v46, 4
    %v48 = vmax.f32 %v46, %v47
    %v49 = vrot.slane %v48, 2
    %v50 = vmax.f32 %v48, %v49
    %v51 = vrot.slane %v50, 1
    %v52 = vmax.f32 %v50, %v51
    %v53 = vsel %vm31, %v28, -inf
    %v54 = vrot.slane %v53, 4
    %v55 = vmax.f32 %v53, %v54
    %v56 = vrot.slane %v55, 2
    %v57 = vmax.f32 %v55, %v56
    %v58 = vrot.slane %v57, 1
    %v59 = vmax.f32 %v57, %v58
    %p60 = scmp.eq.s32.totalorder 0, 0
    // Predicated region
    $region10: #{tpu_custom_call.1} parent=1 // pred_check
      %p61 = pneg %p60
    $region11: #{tpu_custom_call.1} parent=1 // pred_check_branch
      %63 = sbr.rel (%p61) target = $region13
    $region12: #{tpu_custom_call.1} parent=1 // pred_region
      %v68 = vcombine.low %v38, %v45
      %v70 = vunpack.c.l.s4 1966171168
      %v71 = vunpack.c.0.s8 %v70
      %v72 = vlaneseq
      %v73 = vshrl.u32 %v72, 7
      %v74 = vsub.s32 %v71, %v73
      %v75 = vrot.slane %v68, %v74
      %v77 = vunpack.c.l.s4 1966171168
      %v78 = vunpack.c.0.s8 %v77
      %v79 = vlaneseq
      %v80 = vshrl.u32 %v79, 7
      %v81 = vsub.s32 %v78, %v80
      %v82 = vrot.slane %v75, %v81
      %v83 = vcombine.low %v52, %v59
      %v85 = vunpack.c.l.s4 1966171168
      %v86 = vunpack.c.0.s8 %v85
      %v87 = vlaneseq
      %v88 = vshrl.u32 %v87, 7
      %v89 = vsub.s32 %v86, %v88
      %v90 = vrot.slane %v83, %v89
      %v92 = vunpack.c.l.s4 1966171168
      %v93 = vunpack.c.0.s8 %v92
      %v94 = vlaneseq
      %v95 = vshrl.u32 %v94, 7
      %v96 = vsub.s32 %v93, %v95
      %v97 = vrot.slane %v90, %v96
      %v100 = vlaneseq
      %vm101 = vcmp.ge.s32.totalorder %v100, 0
      %vm102 = vcmp.lt.s32.totalorder %v100, 256
      %vm103 = vmand %vm101, %vm102
      %104 = vst.msk [vmem:[#allocation5] sm:$0x3] %vm103, %v82
      %105 = vst.msk [vmem:[#allocation5 + $0x2] sm:$0x3] %vm103, %v97
    $region13: #{tpu_custom_call.1} parent=1 // pred_fallthru
      _
    %p106 = scmp.gt.s32.totalorder 0, 0
    // Predicated region
    $region14: #{tpu_custom_call.1} parent=1 // pred_check
      %p107 = pneg %p106
    $region15: #{tpu_custom_call.1} parent=1 // pred_check_branch
      %109 = sbr.rel (%p107) target = $region17
    $region16: #{tpu_custom_call.1} parent=1 // pred_region
      %v110 = vld [vmem:[#allocation5] sm:$0x3]
      %v111 = vld [vmem:[#allocation5 + $0x2] sm:$0x3]
      %v116 = vcombine.low %v38, %v45
      %v118 = vunpack.c.l.s4 1966171168
      %v119 = vunpack.c.0.s8 %v118
      %v120 = vlaneseq
      %v121 = vshrl.u32 %v120, 7
      %v122 = vsub.s32 %v119, %v121
      %v123 = vrot.slane %v116, %v122
      %v125 = vunpack.c.l.s4 1966171168
      %v126 = vunpack.c.0.s8 %v125
      %v127 = vlaneseq
      %v128 = vshrl.u32 %v127, 7
      %v129 = vsub.s32 %v126, %v128
      %v130 = vrot.slane %v123, %v129
      %v131 = vcombine.low %v52, %v59
      %v133 = vunpack.c.l.s4 1966171168
      %v134 = vunpack.c.0.s8 %v133
      %v135 = vlaneseq
      %v136 = vshrl.u32 %v135, 7
      %v137 = vsub.s32 %v134, %v136
      %v138 = vrot.slane %v131, %v137
      %v140 = vunpack.c.l.s4 1966171168
      %v141 = vunpack.c.0.s8 %v140
      %v142 = vlaneseq
      %v143 = vshrl.u32 %v142, 7
      %v144 = vsub.s32 %v141, %v143
      %v145 = vrot.slane %v138, %v144
      %v148 = vmax.f32 %v110, %v130
      %v149 = vmax.f32 %v111, %v145
      %v150 = vlaneseq
      %vm151 = vcmp.ge.s32.totalorder %v150, 0
      %vm152 = vcmp.lt.s32.totalorder %v150, 256
      %vm153 = vmand %vm151, %vm152
      %154 = vst.msk [vmem:[#allocation5] sm:$0x3] %vm153, %v148
      %155 = vst.msk [vmem:[#allocation5 + $0x2] sm:$0x3] %vm153, %v149
    $region17: #{tpu_custom_call.1} parent=1 // pred_fallthru
      _
    // Predicated region
    $region18: #{tpu_custom_call.1} parent=1 // pred_check
      _
    $region19: #{tpu_custom_call.1} parent=1 // pred_check_branch
      %157 = sbr.rel (0) target = $region21
    $region20: #{tpu_custom_call.1} parent=1 // pred_region
      %s159 = ssub.s32 64, 64
      %160 = vsyncadd [#allocation4], %s159
      %s161 = sshll.u32 [#allocation5], 4
      %s162 = int_to_ptr.vmem [resolvable:$true] %s161
      %167 = dma.vmem_to_hbm [thread:$0]  %s162, 64, %s1, [#allocation4], 32, 32, 2
    $region21: #{tpu_custom_call.1} parent=1 // pred_fallthru
      _
    // Predicated region
    $region22: #{tpu_custom_call.1} parent=1 // pred_check
      _
    $region23: #{tpu_custom_call.1} parent=1 // pred_check_branch
      %169 = sbr.rel (0) target = $region25
    $region24: #{tpu_custom_call.1} parent=1 // pred_region
      %170 = dma.done [#allocation4], 64
    $region25: #{tpu_custom_call.1} parent=1 // pred_fallthru
      _
    %171 = vsyncpa [#allocation3], 1
    %172 = vsyncpa [#allocation4], 1

</llo_original>
